<compile_context>
chip_gen: v7x
topology: tpu7x:2x2x1
jax: 0.10.0
libtpu: 0.0.40
codegen_flags: <defaults>
</compile_context>

<pallas_src>
import functools

import jax
import jax.numpy as jnp
import numpy as np
from jax.experimental import pallas as pl
from jax.experimental.pallas import tpu as pltpu

BN_EPS = 1e-5
NEG_INF = -1e30


# ---------------------------------------------------------------------------
# Fused kernel: stage-1 attention -> stage-2 attention (same row order), one
# grid step handles whole batch elements stacked along rows.
# ---------------------------------------------------------------------------
def nlb_fused_kernel(x_ref, g1c_ref, g1r_ref, g2c_ref, g2r_ref,
                     w1_ref, s1_ref, b1_ref, w2_ref, s2_ref, b2_ref,
                     out_ref, *, LC):
    # Group-local attention == full (R, R) attention with an additive block-diag
    # mask; masks built in-kernel from O(R) group-id vectors (broadcast compare).
    mask1 = jnp.where(g1c_ref[...] == g1r_ref[...], 0.0, NEG_INF).astype(jnp.float32)
    mask2 = jnp.where(g2c_ref[...] == g2r_ref[...], 0.0, NEG_INF).astype(jnp.float32)

    def stage(x_bf16, w_ref, s_ref, b_ref, mask):
        # fused q/k/v 1x1 conv: (R, Cin) @ (Cin, 3*LC), bf16 operands, f32 accum
        y = jnp.dot(x_bf16, w_ref[...], preferred_element_type=jnp.float32)
        y = jnp.maximum(y * s_ref[...] + b_ref[...], 0.0)       # folded BN + ReLU (f32)
        q = y[:, 0:LC].astype(jnp.bfloat16)                     # 128-lane aligned slices
        k = y[:, LC:2 * LC].astype(jnp.bfloat16)
        v = y[:, 2 * LC:3 * LC].astype(jnp.bfloat16)
        logits = jax.lax.dot_general(q, k, (((1,), (1,)), ((), ())),
                                     preferred_element_type=jnp.float32)
        logits = logits + mask                                  # stays f32 end-to-end
        p = jnp.exp(logits - jnp.max(logits, axis=-1, keepdims=True))
        p = p * pl.reciprocal(jnp.sum(p, axis=-1, keepdims=True), approx=True)
        return jnp.dot(p.astype(jnp.bfloat16), v, preferred_element_type=jnp.float32)

    f1 = stage(x_ref[...], w1_ref, s1_ref, b1_ref, mask1)       # (R, LC) f32, rows n=m*S+s
    f2 = stage(f1.astype(jnp.bfloat16), w2_ref, s2_ref, b2_ref, mask2)
    out_ref[...] = f2                                           # rows still n = m*S+s


# ---------------------------------------------------------------------------
# Wrapper: NCHW (B, C, N, 1) in / out, like the PyTorch module
# ---------------------------------------------------------------------------
def _pack_stage(sp, c_in_pad, LC):
    """Fuse q/k/v 1x1-conv weights into (c_in_pad, 3*LC) + folded-BN scale/bias."""
    c_in, c_out = sp['q']['w'].shape
    w = jnp.zeros((c_in_pad, 3 * LC), jnp.float32)
    scale = jnp.zeros((1, 3 * LC), jnp.float32)
    bias = jnp.zeros((1, 3 * LC), jnp.float32)
    for i, name in enumerate(('q', 'k', 'v')):
        w = w.at[:c_in, i * LC:i * LC + c_out].set(sp[name]['w'])
        scale = scale.at[0, i * LC:i * LC + c_out].set(sp[name]['scale'])
        bias = bias.at[0, i * LC:i * LC + c_out].set(sp[name]['bias'])
    return w.astype(jnp.bfloat16), scale, bias


def non_local_block(feature_nchw, params, *, num_slice, batch_chunks=1):
    B, C, N, _ = feature_nchw.shape
    S = num_slice
    M = N // S
    assert N % S == 0 and B % batch_chunks == 0
    R = (B // batch_chunks) * N                 # rows per grid step (whole batch elems)
    BN = B * N
    LC = ((C + 127) // 128) * 128               # channel width padded to a 128-lane tile

    # NCHW -> channels-last rows (n = m*S + s), bf16 MXU LHS (one fused XLA copy).
    x = jnp.transpose(feature_nchw[..., 0], (0, 2, 1)).reshape(BN, C).astype(jnp.bfloat16)

    # O(R) group-id vectors over the *local* row index (chunks hold whole batch
    # elements, so group equality only depends on the local index).
    l = np.arange(R)
    g1 = (l // S).astype(np.int32)                      # stage 1: same (batch, m) slice
    g2 = ((l // N) * S + (l % S)).astype(np.int32)      # stage 2: same (batch, s) slice
    g1c, g1r = jnp.asarray(g1[:, None]), jnp.asarray(g1[None, :])
    g2c, g2r = jnp.asarray(g2[:, None]), jnp.asarray(g2[None, :])

    w1, s1, b1 = _pack_stage(params['stage1'], C, LC)
    w2, s2, b2 = _pack_stage(params['stage2'], LC, LC)  # stage-2 input is LC-padded

    consts = [g1c, g1r, g2c, g2r, w1, s1, b1, w2, s2, b2]
    in_specs = [pl.BlockSpec((R, C), lambda i: (i, 0))]
    in_specs += [pl.BlockSpec(c.shape, lambda i: (0, 0)) for c in consts]

    out = pl.pallas_call(
        functools.partial(nlb_fused_kernel, LC=LC),
        out_shape=jax.ShapeDtypeStruct((BN, LC), jnp.float32),
        grid=(batch_chunks,),
        in_specs=in_specs,
        out_specs=pl.BlockSpec((R, LC), lambda i: (i, 0)),
        compiler_params=pltpu.CompilerParams(dimension_semantics=("parallel",)),
    )(x, *consts)                                        # (B*N, LC), rows n = m*S + s

    # Fuse the module's permute(0,3,2,1) row reorder + channel un-pad + NCHW
    # transpose into the single wrapper-side output copy: output row n' = s*M + m.
    n = np.arange(N)
    src = (n % M) * S + n // M                           # out row n' reads kernel row src[n']
    out = out.reshape(B, N, LC)[:, src, :C]              # (B, N, C), n' = s*M + m
    return jnp.transpose(out, (0, 2, 1))[..., None]      # (B, C, N, 1)


# ---------------------------------------------------------------------------
# Deterministic synthetic params (eval-mode BN folded into scale/bias)
# ---------------------------------------------------------------------------
def init_params(key, C):
    keys = iter(jax.random.split(key, 30))

    def conv_bn(cin, cout):
        w = 0.1 * jax.random.normal(next(keys), (cin, cout), jnp.float32)
        gamma = 1.0 + 0.1 * jax.random.normal(next(keys), (cout,), jnp.float32)
        beta = 0.1 * jax.random.normal(next(keys), (cout,), jnp.float32)
        mean = 0.1 * jax.random.normal(next(keys), (cout,), jnp.float32)
        var = 1.0 + 0.1 * jnp.abs(jax.random.normal(next(keys), (cout,), jnp.float32))
        scale = gamma / jnp.sqrt(var + BN_EPS)
        bias = beta - mean * scale
        return dict(w=w, scale=scale, bias=bias)

    def stage():
        return dict(q=conv_bn(C, C), k=conv_bn(C, C), v=conv_bn(C, C))

    return dict(stage1=stage(), stage2=stage())


# ---------------------------------------------------------------------------
# Pure-JAX f32 reference mirroring the PyTorch NCHW forward exactly
# ---------------------------------------------------------------------------
def reference(feature, params, num_slice):
    def conv_bn_relu(x, layer):
        y = jnp.einsum('bchw,cd->bdhw', x, layer['w'])
        y = y * layer['scale'].reshape(1, -1, 1, 1) + layer['bias'].reshape(1, -1, 1, 1)
        return jnp.maximum(y, 0.0)

    B, d, N, _ = feature.shape
    S = num_slice
    M = N // S
    f = feature.reshape(B, d, M, S)

    def stage(x, sp):
        q = conv_bn_relu(x, sp['q']).transpose(0, 2, 3, 1)
        k = conv_bn_relu(x, sp['k']).transpose(0, 2, 3, 1)
        v = conv_bn_relu(x, sp['v']).transpose(0, 2, 3, 1)
        w = jax.nn.softmax(q @ jnp.swapaxes(k, -1, -2), axis=-1)
        return w @ v

    f1 = stage(f, params['stage1'])            # (B, M, S, d)
    f1 = f1.transpose(0, 3, 2, 1)              # (B, d, S, M)
    f2 = stage(f1, params['stage2'])           # (B, S, M, d)
    return f2.reshape(B, N, 1, d).transpose(0, 3, 1, 2)   # (B, d, N, 1)


if __name__ == "__main__":
    B, C, N, NUM_SLICE = 2, 32, 16, 4          # d_in == d_out == C (module requirement)
    key = jax.random.PRNGKey(0)
    kx, kp = jax.random.split(key)
    feature = jax.random.normal(kx, (B, C, N, 1), jnp.float32)   # NCHW like PyTorch
    params = init_params(kp, C)

    fwd = jax.jit(non_local_block, static_argnames=("num_slice", "batch_chunks"))
    out = jax.block_until_ready(fwd(feature, params, num_slice=NUM_SLICE))
    assert out.shape == (B, C, N, 1)

    ref = jax.block_until_ready(reference(feature, params, NUM_SLICE))
    # bf16 MXU operands (f32 accumulation) vs the pure-f32 reference -> relaxed tol.
    np.testing.assert_allclose(np.asarray(out), np.asarray(ref), rtol=5e-2, atol=5e-2)

    print("KERNEL_OK")
</pallas_src>

<mosaic_0001>
module attributes {stable_mosaic.version = 11 : i64} {
  func.func @nlb_fused_kernel(%arg0: i32, %arg1: memref<32x32xbf16, #tpu.memory_space<vmem>>, %arg2: memref<32x1xi32, #tpu.memory_space<vmem>>, %arg3: memref<1x32xi32, #tpu.memory_space<vmem>>, %arg4: memref<32x1xi32, #tpu.memory_space<vmem>>, %arg5: memref<1x32xi32, #tpu.memory_space<vmem>>, %arg6: memref<32x384xbf16, #tpu.memory_space<vmem>>, %arg7: memref<1x384xf32, #tpu.memory_space<vmem>>, %arg8: memref<1x384xf32, #tpu.memory_space<vmem>>, %arg9: memref<128x384xbf16, #tpu.memory_space<vmem>>, %arg10: memref<1x384xf32, #tpu.memory_space<vmem>>, %arg11: memref<1x384xf32, #tpu.memory_space<vmem>>, %arg12: memref<32x128xf32, #tpu.memory_space<vmem>>) attributes {dimension_semantics = [#tpu.dimension_semantics<parallel>], iteration_bounds = array<i64: 1>, scalar_prefetch = 0 : i64, scratch_operands = 0 : i64, tpu.core_type = #tpu.core_type<tc>, window_params = [{transform_indices = @transform_0, window_bounds = array<i64: 32, 32>}, {pipeline_mode = #tpu.pipeline_mode<synchronous>, transform_indices = @transform_1, window_bounds = array<i64: 32, 1>}, {pipeline_mode = #tpu.pipeline_mode<synchronous>, transform_indices = @transform_2, window_bounds = array<i64: 1, 32>}, {pipeline_mode = #tpu.pipeline_mode<synchronous>, transform_indices = @transform_3, window_bounds = array<i64: 32, 1>}, {pipeline_mode = #tpu.pipeline_mode<synchronous>, transform_indices = @transform_4, window_bounds = array<i64: 1, 32>}, {pipeline_mode = #tpu.pipeline_mode<synchronous>, transform_indices = @transform_5, window_bounds = array<i64: 32, 384>}, {pipeline_mode = #tpu.pipeline_mode<synchronous>, transform_indices = @transform_6, window_bounds = array<i64: 1, 384>}, {pipeline_mode = #tpu.pipeline_mode<synchronous>, transform_indices = @transform_7, window_bounds = array<i64: 1, 384>}, {pipeline_mode = #tpu.pipeline_mode<synchronous>, transform_indices = @transform_8, window_bounds = array<i64: 128, 384>}, {pipeline_mode = #tpu.pipeline_mode<synchronous>, transform_indices = @transform_9, window_bounds = array<i64: 1, 384>}, {pipeline_mode = #tpu.pipeline_mode<synchronous>, transform_indices = @transform_10, window_bounds = array<i64: 1, 384>}, {transform_indices = @transform_11, window_bounds = array<i64: 32, 128>}]} {
    %c0 = arith.constant 0 : index
    %c0_0 = arith.constant 0 : index
    %0 = vector.load %arg2[%c0, %c0_0] : memref<32x1xi32, #tpu.memory_space<vmem>>, vector<32x1xi32>
    %c0_1 = arith.constant 0 : index
    %c0_2 = arith.constant 0 : index
    %1 = vector.load %arg3[%c0_1, %c0_2] : memref<1x32xi32, #tpu.memory_space<vmem>>, vector<1x32xi32>
    %2 = vector.broadcast %0 : vector<32x1xi32> to vector<32x32xi32>
    %3 = vector.broadcast %1 : vector<1x32xi32> to vector<32x32xi32>
    %4 = arith.cmpi eq, %2, %3 : vector<32x32xi32>
    %cst = arith.constant 0.000000e+00 : f32
    %cst_3 = arith.constant -1.000000e+30 : f32
    %5 = vector.broadcast %cst : f32 to vector<32x32xf32>
    %6 = vector.broadcast %cst_3 : f32 to vector<32x32xf32>
    %7 = arith.select %4, %5, %6 : vector<32x32xi1>, vector<32x32xf32>
    %c0_4 = arith.constant 0 : index
    %c0_5 = arith.constant 0 : index
    %8 = vector.load %arg4[%c0_4, %c0_5] : memref<32x1xi32, #tpu.memory_space<vmem>>, vector<32x1xi32>
    %c0_6 = arith.constant 0 : index
    %c0_7 = arith.constant 0 : index
    %9 = vector.load %arg5[%c0_6, %c0_7] : memref<1x32xi32, #tpu.memory_space<vmem>>, vector<1x32xi32>
    %10 = vector.broadcast %8 : vector<32x1xi32> to vector<32x32xi32>
    %11 = vector.broadcast %9 : vector<1x32xi32> to vector<32x32xi32>
    %12 = arith.cmpi eq, %10, %11 : vector<32x32xi32>
    %cst_8 = arith.constant 0.000000e+00 : f32
    %cst_9 = arith.constant -1.000000e+30 : f32
    %13 = vector.broadcast %cst_8 : f32 to vector<32x32xf32>
    %14 = vector.broadcast %cst_9 : f32 to vector<32x32xf32>
    %15 = arith.select %12, %13, %14 : vector<32x32xi1>, vector<32x32xf32>
    %c0_10 = arith.constant 0 : index
    %c0_11 = arith.constant 0 : index
    %16 = vector.load %arg1[%c0_10, %c0_11] : memref<32x32xbf16, #tpu.memory_space<vmem>>, vector<32x32xbf16>
    %c0_12 = arith.constant 0 : index
    %c0_13 = arith.constant 0 : index
    %17 = vector.load %arg6[%c0_12, %c0_13] : memref<32x384xbf16, #tpu.memory_space<vmem>>, vector<32x384xbf16>
    %cst_14 = arith.constant dense<0.000000e+00> : vector<32x384xf32>
    %18 = tpu.matmul %16, %17, %cst_14 {dimension_numbers = #tpu.dot_dimension_numbers<[1], [0], [0], [1], [0, 0, 1, 1], [], []>} : vector<32x32xbf16>, vector<32x384xbf16>, vector<32x384xf32> -> vector<32x384xf32>
    %c0_15 = arith.constant 0 : index
    %c0_16 = arith.constant 0 : index
    %19 = vector.load %arg7[%c0_15, %c0_16] : memref<1x384xf32, #tpu.memory_space<vmem>>, vector<1x384xf32>
    %20 = vector.broadcast %19 : vector<1x384xf32> to vector<32x384xf32>
    %21 = arith.mulf %18, %20 : vector<32x384xf32>
    %c0_17 = arith.constant 0 : index
    %c0_18 = arith.constant 0 : index
    %22 = vector.load %arg8[%c0_17, %c0_18] : memref<1x384xf32, #tpu.memory_space<vmem>>, vector<1x384xf32>
    %23 = vector.broadcast %22 : vector<1x384xf32> to vector<32x384xf32>
    %24 = arith.addf %21, %23 : vector<32x384xf32>
    %cst_19 = arith.constant 0.000000e+00 : f32
    %25 = vector.broadcast %cst_19 : f32 to vector<32x384xf32>
    %26 = arith.maximumf %24, %25 : vector<32x384xf32>
    %27 = vector.extract_strided_slice %26 {offsets = [0, 0], sizes = [32, 128], strides = [1, 1]} : vector<32x384xf32> to vector<32x128xf32>
    %28 = arith.truncf %27 : vector<32x128xf32> to vector<32x128xbf16>
    %29 = vector.extract_strided_slice %26 {offsets = [0, 128], sizes = [32, 128], strides = [1, 1]} : vector<32x384xf32> to vector<32x128xf32>
    %30 = arith.truncf %29 : vector<32x128xf32> to vector<32x128xbf16>
    %31 = vector.extract_strided_slice %26 {offsets = [0, 256], sizes = [32, 128], strides = [1, 1]} : vector<32x384xf32> to vector<32x128xf32>
    %32 = arith.truncf %31 : vector<32x128xf32> to vector<32x128xbf16>
    %cst_20 = arith.constant dense<0.000000e+00> : vector<32x32xf32>
    %33 = tpu.matmul %28, %30, %cst_20 {dimension_numbers = #tpu.dot_dimension_numbers<[1], [1], [0], [0], [0, 0, 1, 0], [], []>} : vector<32x128xbf16>, vector<32x128xbf16>, vector<32x32xf32> -> vector<32x32xf32>
    %34 = arith.addf %33, %7 : vector<32x32xf32>
    %cst_21 = arith.constant dense<0xFF800000> : vector<32xf32>
    %35 = vector.multi_reduction <maximumf>, %34, %cst_21 [1] : vector<32x32xf32> to vector<32xf32>
    %36 = vector.shape_cast %35 : vector<32xf32> to vector<32x1xf32>
    %37 = vector.broadcast %36 : vector<32x1xf32> to vector<32x32xf32>
    %38 = arith.subf %34, %37 : vector<32x32xf32>
    %39 = math.exp %38 : vector<32x32xf32>
    %cst_22 = arith.constant dense<0.000000e+00> : vector<32xf32>
    %40 = vector.multi_reduction <add>, %39, %cst_22 [1] : vector<32x32xf32> to vector<32xf32>
    %41 = vector.shape_cast %40 : vector<32xf32> to vector<32x1xf32>
    %42 = tpu.reciprocal %41 {approx = true} : vector<32x1xf32> -> vector<32x1xf32>
    %43 = vector.broadcast %42 : vector<32x1xf32> to vector<32x32xf32>
    %44 = arith.mulf %39, %43 : vector<32x32xf32>
    %45 = arith.truncf %44 : vector<32x32xf32> to vector<32x32xbf16>
    %cst_23 = arith.constant dense<0.000000e+00> : vector<32x128xf32>
    %46 = tpu.matmul %45, %32, %cst_23 {dimension_numbers = #tpu.dot_dimension_numbers<[1], [0], [0], [1], [0, 0, 1, 1], [], []>} : vector<32x32xbf16>, vector<32x128xbf16>, vector<32x128xf32> -> vector<32x128xf32>
    %47 = arith.truncf %46 : vector<32x128xf32> to vector<32x128xbf16>
    %c0_24 = arith.constant 0 : index
    %c0_25 = arith.constant 0 : index
    %48 = vector.load %arg9[%c0_24, %c0_25] : memref<128x384xbf16, #tpu.memory_space<vmem>>, vector<128x384xbf16>
    %cst_26 = arith.constant dense<0.000000e+00> : vector<32x384xf32>
    %49 = tpu.matmul %47, %48, %cst_26 {dimension_numbers = #tpu.dot_dimension_numbers<[1], [0], [0], [1], [0, 0, 1, 1], [], []>} : vector<32x128xbf16>, vector<128x384xbf16>, vector<32x384xf32> -> vector<32x384xf32>
    %c0_27 = arith.constant 0 : index
    %c0_28 = arith.constant 0 : index
    %50 = vector.load %arg10[%c0_27, %c0_28] : memref<1x384xf32, #tpu.memory_space<vmem>>, vector<1x384xf32>
    %51 = vector.broadcast %50 : vector<1x384xf32> to vector<32x384xf32>
    %52 = arith.mulf %49, %51 : vector<32x384xf32>
    %c0_29 = arith.constant 0 : index
    %c0_30 = arith.constant 0 : index
    %53 = vector.load %arg11[%c0_29, %c0_30] : memref<1x384xf32, #tpu.memory_space<vmem>>, vector<1x384xf32>
    %54 = vector.broadcast %53 : vector<1x384xf32> to vector<32x384xf32>
    %55 = arith.addf %52, %54 : vector<32x384xf32>
    %cst_31 = arith.constant 0.000000e+00 : f32
    %56 = vector.broadcast %cst_31 : f32 to vector<32x384xf32>
    %57 = arith.maximumf %55, %56 : vector<32x384xf32>
    %58 = vector.extract_strided_slice %57 {offsets = [0, 0], sizes = [32, 128], strides = [1, 1]} : vector<32x384xf32> to vector<32x128xf32>
    %59 = arith.truncf %58 : vector<32x128xf32> to vector<32x128xbf16>
    %60 = vector.extract_strided_slice %57 {offsets = [0, 128], sizes = [32, 128], strides = [1, 1]} : vector<32x384xf32> to vector<32x128xf32>
    %61 = arith.truncf %60 : vector<32x128xf32> to vector<32x128xbf16>
    %62 = vector.extract_strided_slice %57 {offsets = [0, 256], sizes = [32, 128], strides = [1, 1]} : vector<32x384xf32> to vector<32x128xf32>
    %63 = arith.truncf %62 : vector<32x128xf32> to vector<32x128xbf16>
    %cst_32 = arith.constant dense<0.000000e+00> : vector<32x32xf32>
    %64 = tpu.matmul %59, %61, %cst_32 {dimension_numbers = #tpu.dot_dimension_numbers<[1], [1], [0], [0], [0, 0, 1, 0], [], []>} : vector<32x128xbf16>, vector<32x128xbf16>, vector<32x32xf32> -> vector<32x32xf32>
    %65 = arith.addf %64, %15 : vector<32x32xf32>
    %cst_33 = arith.constant dense<0xFF800000> : vector<32xf32>
    %66 = vector.multi_reduction <maximumf>, %65, %cst_33 [1] : vector<32x32xf32> to vector<32xf32>
    %67 = vector.shape_cast %66 : vector<32xf32> to vector<32x1xf32>
    %68 = vector.broadcast %67 : vector<32x1xf32> to vector<32x32xf32>
    %69 = arith.subf %65, %68 : vector<32x32xf32>
    %70 = math.exp %69 : vector<32x32xf32>
    %cst_34 = arith.constant dense<0.000000e+00> : vector<32xf32>
    %71 = vector.multi_reduction <add>, %70, %cst_34 [1] : vector<32x32xf32> to vector<32xf32>
    %72 = vector.shape_cast %71 : vector<32xf32> to vector<32x1xf32>
    %73 = tpu.reciprocal %72 {approx = true} : vector<32x1xf32> -> vector<32x1xf32>
    %74 = vector.broadcast %73 : vector<32x1xf32> to vector<32x32xf32>
    %75 = arith.mulf %70, %74 : vector<32x32xf32>
    %76 = arith.truncf %75 : vector<32x32xf32> to vector<32x32xbf16>
    %cst_35 = arith.constant dense<0.000000e+00> : vector<32x128xf32>
    %77 = tpu.matmul %76, %63, %cst_35 {dimension_numbers = #tpu.dot_dimension_numbers<[1], [0], [0], [1], [0, 0, 1, 1], [], []>} : vector<32x32xbf16>, vector<32x128xbf16>, vector<32x128xf32> -> vector<32x128xf32>
    %c0_36 = arith.constant 0 : index
    %c0_37 = arith.constant 0 : index
    %78 = vector.load %arg12[%c0_36, %c0_37] : memref<32x128xf32, #tpu.memory_space<vmem>>, vector<32x128xf32>
    tpu.vector_store %arg12[%c0_36, %c0_37], %77 {strides = array<i32>} : memref<32x128xf32, #tpu.memory_space<vmem>>, vector<32x128xf32>,
    return
  }
  func.func @transform_0(%arg0: i32) -> (i32, i32) {
    %c0_i32 = arith.constant 0 : i32
    %c0_i32_0 = arith.constant 0 : i32
    return %arg0, %c0_i32 : i32, i32
  }
  func.func @transform_1(%arg0: i32) -> (i32, i32) {
    %c0_i32 = arith.constant 0 : i32
    %c0_i32_0 = arith.constant 0 : i32
    %c0_i32_1 = arith.constant 0 : i32
    return %c0_i32, %c0_i32_0 : i32, i32
  }
  func.func @transform_2(%arg0: i32) -> (i32, i32) {
    %c0_i32 = arith.constant 0 : i32
    %c0_i32_0 = arith.constant 0 : i32
    %c0_i32_1 = arith.constant 0 : i32
    return %c0_i32, %c0_i32_0 : i32, i32
  }
  func.func @transform_3(%arg0: i32) -> (i32, i32) {
    %c0_i32 = arith.constant 0 : i32
    %c0_i32_0 = arith.constant 0 : i32
    %c0_i32_1 = arith.constant 0 : i32
    return %c0_i32, %c0_i32_0 : i32, i32
  }
  func.func @transform_4(%arg0: i32) -> (i32, i32) {
    %c0_i32 = arith.constant 0 : i32
    %c0_i32_0 = arith.constant 0 : i32
    %c0_i32_1 = arith.constant 0 : i32
    return %c0_i32, %c0_i32_0 : i32, i32
  }
  func.func @transform_5(%arg0: i32) -> (i32, i32) {
    %c0_i32 = arith.constant 0 : i32
    %c0_i32_0 = arith.constant 0 : i32
    %c0_i32_1 = arith.constant 0 : i32
    return %c0_i32, %c0_i32_0 : i32, i32
  }
  func.func @transform_6(%arg0: i32) -> (i32, i32) {
    %c0_i32 = arith.constant 0 : i32
    %c0_i32_0 = arith.constant 0 : i32
    %c0_i32_1 = arith.constant 0 : i32
    return %c0_i32, %c0_i32_0 : i32, i32
  }
  func.func @transform_7(%arg0: i32) -> (i32, i32) {
    %c0_i32 = arith.constant 0 : i32
    %c0_i32_0 = arith.constant 0 : i32
    %c0_i32_1 = arith.constant 0 : i32
    return %c0_i32, %c0_i32_0 : i32, i32
  }
  func.func @transform_8(%arg0: i32) -> (i32, i32) {
    %c0_i32 = arith.constant 0 : i32
    %c0_i32_0 = arith.constant 0 : i32
    %c0_i32_1 = arith.constant 0 : i32
    return %c0_i32, %c0_i32_0 : i32, i32
  }
  func.func @transform_9(%arg0: i32) -> (i32, i32) {
    %c0_i32 = arith.constant 0 : i32
    %c0_i32_0 = arith.constant 0 : i32
    %c0_i32_1 = arith.constant 0 : i32
    return %c0_i32, %c0_i32_0 : i32, i32
  }
  func.func @transform_10(%arg0: i32) -> (i32, i32) {
    %c0_i32 = arith.constant 0 : i32
    %c0_i32_0 = arith.constant 0 : i32
    %c0_i32_1 = arith.constant 0 : i32
    return %c0_i32, %c0_i32_0 : i32, i32
  }
  func.func @transform_11(%arg0: i32) -> (i32, i32) {
    %c0_i32 = arith.constant 0 : i32
    %c0_i32_0 = arith.constant 0 : i32
    return %arg0, %c0_i32 : i32, i32
  }
}

</mosaic_0001>

<llo_original>
// kernel: non_local_block.1
$region0: #{non_local_block.1}
  #allocation0 [shape = 'u32[]', space=smem, size = 0x4, offset = 0x4, fixed_abs, tag = 'smem constant byte address 0x4 - core index']
  #allocation1 [shape = 'u32[144,128]{1,0:T(1,128)}', space=vmem, size = 0x12000, scoped, tag = 'internal scratch']
  %s0 = inlined_call_operand.vmem [shape: bf16[32,32], index: 0, kind: input, shape index: {}]
  %s1 = inlined_call_operand.vmem [shape: s32[32,1], index: 1, kind: input, shape index: {}]
  %s2 = inlined_call_operand.vmem [shape: s32[1,32], index: 2, kind: input, shape index: {}]
  %s3 = inlined_call_operand.vmem [shape: s32[32,1], index: 3, kind: input, shape index: {}]
  %s4 = inlined_call_operand.vmem [shape: s32[1,32], index: 4, kind: input, shape index: {}]
  %s5 = inlined_call_operand.vmem [shape: bf16[32,384], index: 5, kind: input, shape index: {}]
  %s6 = inlined_call_operand.vmem [shape: f32[1,384], index: 6, kind: input, shape index: {}]
  %s7 = inlined_call_operand.vmem [shape: f32[1,384], index: 7, kind: input, shape index: {}]
  %s8 = inlined_call_operand.vmem [shape: bf16[128,384], index: 8, kind: input, shape index: {}]
  %s9 = inlined_call_operand.vmem [shape: f32[1,384], index: 9, kind: input, shape index: {}]
  %s10 = inlined_call_operand.vmem [shape: f32[1,384], index: 10, kind: input, shape index: {}]
  %s11 = inlined_call_operand.vmem [shape: f32[32,128], index: 11, kind: output, shape index: {}]
  %s12 = sld [smem:[#allocation0]]
  $region54: #{non_local_block.1} parent=0
    _
  %s14 = ssub.s32 1, %s12
  %s15 = scalar_select 0, %s14, %s12
  // Predicated region
  $region2: #{non_local_block.1} parent=0 // pred_check
    _
  $region3: #{non_local_block.1} parent=0 // pred_check_branch
    %17 = sbr.rel (0) target = $region5
  $region4: #{non_local_block.1} parent=0 // pred_region
    _
  $region5: #{non_local_block.1} parent=0 // pred_fallthru
    _
  // Predicated region
  $region6: #{non_local_block.1} parent=0 // pred_check
    _
  $region7: #{non_local_block.1} parent=0 // pred_check_branch
    %19 = sbr.rel (0) target = $region9
  $region8: #{non_local_block.1} parent=0 // pred_region
    _
  $region9: #{non_local_block.1} parent=0 // pred_fallthru
    _
  // Predicated region
  $region10: #{non_local_block.1} parent=0 // pred_check
    _
  $region11: #{non_local_block.1} parent=0 // pred_check_branch
    %21 = sbr.rel (0) target = $region13
  $region12: #{non_local_block.1} parent=0 // pred_region
    _
  $region13: #{non_local_block.1} parent=0 // pred_fallthru
    _
  // Predicated region
  $region14: #{non_local_block.1} parent=0 // pred_check
    _
  $region15: #{non_local_block.1} parent=0 // pred_check_branch
    %23 = sbr.rel (0) target = $region17
  $region16: #{non_local_block.1} parent=0 // pred_region
    _
  $region17: #{non_local_block.1} parent=0 // pred_fallthru
    _
  // Predicated region
  $region18: #{non_local_block.1} parent=0 // pred_check
    _
  $region19: #{non_local_block.1} parent=0 // pred_check_branch
    %25 = sbr.rel (0) target = $region21
  $region20: #{non_local_block.1} parent=0 // pred_region
    _
  $region21: #{non_local_block.1} parent=0 // pred_fallthru
    _
  // Predicated region
  $region22: #{non_local_block.1} parent=0 // pred_check
    _
  $region23: #{non_local_block.1} parent=0 // pred_check_branch
    %27 = sbr.rel (0) target = $region25
  $region24: #{non_local_block.1} parent=0 // pred_region
    _
  $region25: #{non_local_block.1} parent=0 // pred_fallthru
    _
  // Predicated region
  $region26: #{non_local_block.1} parent=0 // pred_check
    _
  $region27: #{non_local_block.1} parent=0 // pred_check_branch
    %29 = sbr.rel (0) target = $region29
  $region28: #{non_local_block.1} parent=0 // pred_region
    _
  $region29: #{non_local_block.1} parent=0 // pred_fallthru
    _
  // Predicated region
  $region30: #{non_local_block.1} parent=0 // pred_check
    _
  $region31: #{non_local_block.1} parent=0 // pred_check_branch
    %31 = sbr.rel (0) target = $region33
  $region32: #{non_local_block.1} parent=0 // pred_region
    _
  $region33: #{non_local_block.1} parent=0 // pred_fallthru
    _
  // Predicated region
  $region34: #{non_local_block.1} parent=0 // pred_check
    _
  $region35: #{non_local_block.1} parent=0 // pred_check_branch
    %33 = sbr.rel (0) target = $region37
  $region36: #{non_local_block.1} parent=0 // pred_region
    _
  $region37: #{non_local_block.1} parent=0 // pred_fallthru
    _
  // Predicated region
  $region38: #{non_local_block.1} parent=0 // pred_check
    _
  $region39: #{non_local_block.1} parent=0 // pred_check_branch
    %35 = sbr.rel (0) target = $region41
  $region40: #{non_local_block.1} parent=0 // pred_region
    _
  $region41: #{non_local_block.1} parent=0 // pred_fallthru
    _
  // Predicated region
  $region42: #{non_local_block.1} parent=0 // pred_check
    _
  $region43: #{non_local_block.1} parent=0 // pred_check_branch
    %37 = sbr.rel (0) target = $region45
  $region44: #{non_local_block.1} parent=0 // pred_region
    _
  $region45: #{non_local_block.1} parent=0 // pred_fallthru
    _
  %v39 = vld [vmem:[%s1] sm:$0xff]
  %v40 = vld [vmem:[%s1 + $0x8] sm:$0xff]
  %v41 = vld [vmem:[%s1 + $0x10] sm:$0xff]
  %v42 = vld [vmem:[%s1 + $0x18] sm:$0xff]
  %v43 = vld [vmem:[%s2] sm:$0x1]
  %44 = vset.pattern.permute.xlu0 0
  %45 = vperm.xlu0 %44, %v39
  %v46 = vpop.permute.xlu0 %45
  %47 = vset.pattern.permute.xlu0 0
  %48 = vperm.xlu0 %47, %v40
  %v49 = vpop.permute.xlu0 %48
  %50 = vset.pattern.permute.xlu0 0
  %51 = vperm.xlu0 %50, %v41
  %v52 = vpop.permute.xlu0 %51
  %53 = vset.pattern.permute.xlu0 0
  %54 = vperm.xlu0 %53, %v42
  %v55 = vpop.permute.xlu0 %54
  %v56 = vlaneseq
  %v57 = vshrl.u32 %v56, 7
  %v58 = vsub.s32 0, %v57
  %v59 = vrot.slane %v43, %v58
  %vm60 = vcmp.eq.s32.totalorder %v46, %v59
  %vm61 = vcmp.eq.s32.totalorder %v49, %v59
  %vm62 = vcmp.eq.s32.totalorder %v52, %v59
  %vm63 = vcmp.eq.s32.totalorder %v55, %v59
  %v64 = vsel %vm60, 0.0, -1e+30
  %v65 = vsel %vm61, 0.0, -1e+30
  %v66 = vsel %vm62, 0.0, -1e+30
  %v67 = vsel %vm63, 0.0, -1e+30
  %v68 = vld [vmem:[%s3] sm:$0xff]
  %v69 = vld [vmem:[%s3 + $0x8] sm:$0xff]
  %v70 = vld [vmem:[%s3 + $0x10] sm:$0xff]
  %v71 = vld [vmem:[%s3 + $0x18] sm:$0xff]
  %v72 = vld [vmem:[%s4] sm:$0x1]
  %73 = vset.pattern.permute.xlu0 0
  %74 = vperm.xlu0 %73, %v68
  %v75 = vpop.permute.xlu0 %74
  %76 = vset.pattern.permute.xlu0 0
  %77 = vperm.xlu0 %76, %v69
  %v78 = vpop.permute.xlu0 %77
  %79 = vset.pattern.permute.xlu0 0
  %80 = vperm.xlu0 %79, %v70
  %v81 = vpop.permute.xlu0 %80
  %82 = vset.pattern.permute.xlu0 0
  %83 = vperm.xlu0 %82, %v71
  %v84 = vpop.permute.xlu0 %83
  %v85 = vlaneseq
  %v86 = vshrl.u32 %v85, 7
  %v87 = vsub.s32 0, %v86
  %v88 = vrot.slane %v72, %v87
  %vm89 = vcmp.eq.s32.totalorder %v75, %v88
  %vm90 = vcmp.eq.s32.totalorder %v78, %v88
  %vm91 = vcmp.eq.s32.totalorder %v81, %v88
  %vm92 = vcmp.eq.s32.totalorder %v84, %v88
  %v93 = vsel %vm89, 0.0, -1e+30
  %v94 = vsel %vm90, 0.0, -1e+30
  %v95 = vsel %vm91, 0.0, -1e+30
  %v96 = vsel %vm92, 0.0, -1e+30
  %v97 = vld [vmem:[%s0] sm:$0xf]
  %v98 = vld [vmem:[%s0 + $0x4] sm:$0xf]
  %v99 = vld [vmem:[%s0 + $0x8] sm:$0xf]
  %v100 = vld [vmem:[%s0 + $0xc] sm:$0xf]
  %v101 = vld [vmem:[%s5] sm:$0xff]
  %v102 = vld [vmem:[%s5 + $0x8] sm:$0xf]
  %v103 = vld [vmem:[%s5 + $0xc] sm:$0xff]
  %v104 = vld [vmem:[%s5 + $0x14] sm:$0xf]
  %v105 = vld [vmem:[%s5 + $0x18] sm:$0xff]
  %v106 = vld [vmem:[%s5 + $0x20] sm:$0xf]
  %v107 = vld [vmem:[%s5 + $0x24] sm:$0xff]
  %v108 = vld [vmem:[%s5 + $0x2c] sm:$0xf]
  %v113 = vunpack.c.l.b16 %v97
  %v114 = vunpack.c.l.b16 %v98
  %v115 = vunpack.c.l.b16 %v99
  %v116 = vunpack.c.l.b16 %v100
  %v117 = vpack.c.b16 %v114, %v113
  %v118 = vpack.c.b16 %v116, %v115
  %v127 = vunpack.c.l.b16 %v101
  %v128 = vunpack.c.h.b16 %v101
  %v129 = vunpack.c.l.b16 %v102
  %v130 = vunpack.c.l.b16 %v103
  %v131 = vunpack.c.h.b16 %v103
  %v132 = vunpack.c.l.b16 %v104
  %v133 = vunpack.c.l.b16 %v105
  %v134 = vunpack.c.h.b16 %v105
  %v135 = vunpack.c.l.b16 %v106
  %v136 = vunpack.c.l.b16 %v107
  %v137 = vunpack.c.h.b16 %v107
  %v138 = vunpack.c.l.b16 %v108
  %v139 = vpack.c.b16 %v130, %v127
  %v140 = vpack.c.b16 %v131, %v128
  %v141 = vpack.c.b16 %v132, %v129
  %v142 = vpack.c.b16 %v136, %v133
  %v143 = vpack.c.b16 %v137, %v134
  %v144 = vpack.c.b16 %v138, %v135
  %vm151 = vcmask 261120
  %v153 = vsel %vm151, %v117, 0
  %v156 = vsel %vm151, %v118, 0
  %158 = vmatprep.subr.bf16.mxu0 %v140
  %159 = vmatpush1.bf16.msra.mxu0 %v139
  %160 = vmatprep.subr.bf16.mxu0 %v143
  %161 = vmatpush1.bf16.msra.mxu0 %v142
  %162 = vmatprep.subr.bf16.mxu0 0
  %163 = vmatpush1.bf16.msra.mxu0 0
  %164 = vmatprep.subr.bf16.mxu0 0
  %165 = vmatpush1.bf16.msra.mxu0 0
  %166 = vmatprep.subr.bf16.mxu0 0
  %167 = vmatpush1.bf16.msra.mxu0 0
  %168 = vmatprep.subr.bf16.mxu0 0
  %169 = vmatpush1.bf16.msra.mxu0 0
  %170 = vmatprep.subr.bf16.mxu0 0
  %171 = vmatpush1.bf16.msra.mxu0 0
  %172 = vmatprep.subr.bf16.mxu0 0
  %173 = vmatpush1.bf16.msra.mxu0 0
  %174 = vmatprep.subr.bf16.mxu0 0
  %175 = vmatpush1.bf16.msra.mxu0 0
  %176 = vmatprep.subr.bf16.mxu0 0
  %177 = vmatpush1.bf16.msra.mxu0 0
  %178 = vmatprep.subr.bf16.mxu0 0
  %179 = vmatpush1.bf16.msra.mxu0 0
  %180 = vmatprep.subr.bf16.mxu0 0
  %181 = vmatpush1.bf16.msra.mxu0 0
  %182 = vmatprep.subr.bf16.mxu0 0
  %183 = vmatpush1.bf16.msra.mxu0 0
  %184 = vmatprep.subr.bf16.mxu0 0
  %185 = vmatpush1.bf16.msra.mxu0 0
  %186 = vmatprep.subr.bf16.mxu0 0
  %187 = vmatpush1.bf16.msra.mxu0 0
  %188 = vmatprep.subr.bf16.mxu0 0
  %189 = vmatpush1.bf16.msra.mxu0 0
  %190 = vmatprep.mubr.bf16.mxu0 0
  %191 = vmatmul.mubr.bf16.gmra.mrb[0].mxu0 %v153
  %v192 = vpop.f32.mrb[0].mxu0
  %v193 = vadd.f32 0.0, %v192
  %v194 = vpop.f32.mrb[0].mxu0
  %v195 = vadd.f32 0.0, %v194
  %v196 = vpop.f32.mrb[0].mxu0
  %v197 = vadd.f32 0.0, %v196
  %v198 = vpop.f32.mrb[0].mxu0
  %v199 = vadd.f32 0.0, %v198
  %200 = vmatprep.mubr.bf16.mxu0 0
  %201 = vmatmul.mubr.bf16.gmra.mrb[0].mxu0 %v156
  %v202 = vpop.f32.mrb[0].mxu0
  %v203 = vadd.f32 0.0, %v202
  %v204 = vpop.f32.mrb[0].mxu0
  %v205 = vadd.f32 0.0, %v204
  %v206 = vpop.f32.mrb[0].mxu0
  %v207 = vadd.f32 0.0, %v206
  %v208 = vpop.f32.mrb[0].mxu0
  %v209 = vadd.f32 0.0, %v208
  %210 = vdwg.mxu0
  %211 = vmatprep.subr.bf16.mxu0 0
  %212 = vmatpush1.bf16.msra.mxu0 %v141
  %213 = vmatprep.subr.bf16.mxu0 0
  %214 = vmatpush1.bf16.msra.mxu0 %v144
  %215 = vmatprep.subr.bf16.mxu0 0
  %216 = vmatpush1.bf16.msra.mxu0 0
  %217 = vmatprep.subr.bf16.mxu0 0
  %218 = vmatpush1.bf16.msra.mxu0 0
  %219 = vmatprep.subr.bf16.mxu0 0
  %220 = vmatpush1.bf16.msra.mxu0 0
  %221 = vmatprep.subr.bf16.mxu0 0
  %222 = vmatpush1.bf16.msra.mxu0 0
  %223 = vmatprep.subr.bf16.mxu0 0
  %224 = vmatpush1.bf16.msra.mxu0 0
  %225 = vmatprep.subr.bf16.mxu0 0
  %226 = vmatpush1.bf16.msra.mxu0 0
  %227 = vmatprep.subr.bf16.mxu0 0
  %228 = vmatpush1.bf16.msra.mxu0 0
  %229 = vmatprep.subr.bf16.mxu0 0
  %230 = vmatpush1.bf16.msra.mxu0 0
  %231 = vmatprep.subr.bf16.mxu0 0
  %232 = vmatpush1.bf16.msra.mxu0 0
  %233 = vmatprep.subr.bf16.mxu0 0
  %234 = vmatpush1.bf16.msra.mxu0 0
  %235 = vmatprep.subr.bf16.mxu0 0
  %236 = vmatpush1.bf16.msra.mxu0 0
  %237 = vmatprep.subr.bf16.mxu0 0
  %238 = vmatpush1.bf16.msra.mxu0 0
  %239 = vmatprep.subr.bf16.mxu0 0
  %240 = vmatpush1.bf16.msra.mxu0 0
  %241 = vmatprep.subr.bf16.mxu0 0
  %242 = vmatpush1.bf16.msra.mxu0 0
  %243 = vmatprep.mubr.bf16.mxu0 0
  %244 = vmatmul.mubr.bf16.gmra.mrb[0].mxu0 %v153
  %v245 = vpop.f32.mrb[0].mxu0
  %v246 = vadd.f32 0.0, %v245
  %v247 = vpop.f32.mrb[0].mxu0
  %v248 = vpop.f32.mrb[0].mxu0
  %v249 = vadd.f32 0.0, %v248
  %v250 = vpop.f32.mrb[0].mxu0
  %251 = vmatprep.mubr.bf16.mxu0 0
  %252 = vmatmul.mubr.bf16.gmra.mrb[0].mxu0 %v156
  %v253 = vpop.f32.mrb[0].mxu0
  %v254 = vadd.f32 0.0, %v253
  %v255 = vpop.f32.mrb[0].mxu0
  %v256 = vpop.f32.mrb[0].mxu0
  %v257 = vadd.f32 0.0, %v256
  %v258 = vpop.f32.mrb[0].mxu0
  %259 = vdwg.mxu0
  %v260 = vld [vmem:[%s6] sm:$0x7]
  %v262 = vlaneseq
  %v263 = vshrl.u32 %v262, 7
  %v264 = vsub.s32 0, %v263
  %v265 = vrot.slane %v260, %v264
  %v266 = vlaneseq
  %v267 = vshrl.u32 %v266, 7
  %v268 = vsub.s32 1, %v267
  %v269 = vrot.slane %v260, %v268
  %v270 = vlaneseq
  %v271 = vshrl.u32 %v270, 7
  %v272 = vsub.s32 2, %v271
  %v273 = vrot.slane %v260, %v272
  %v277 = vmul.f32 %v193, %v265
  %v278 = vmul.f32 %v195, %v269
  %v279 = vmul.f32 %v246, %v273
  %v280 = vmul.f32 %v197, %v265
  %v281 = vmul.f32 %v199, %v269
  %v282 = vmul.f32 %v249, %v273
  %v283 = vmul.f32 %v203, %v265
  %v284 = vmul.f32 %v205, %v269
  %v285 = vmul.f32 %v254, %v273
  %v286 = vmul.f32 %v207, %v265
  %v287 = vmul.f32 %v209, %v269
  %v288 = vmul.f32 %v257, %v273
  %v289 = vld [vmem:[%s7] sm:$0x7]
  %v291 = vlaneseq
  %v292 = vshrl.u32 %v291, 7
  %v293 = vsub.s32 0, %v292
  %v294 = vrot.slane %v289, %v293
  %v295 = vlaneseq
  %v296 = vshrl.u32 %v295, 7
  %v297 = vsub.s32 1, %v296
  %v298 = vrot.slane %v289, %v297
  %v299 = vlaneseq
  %v300 = vshrl.u32 %v299, 7
  %v301 = vsub.s32 2, %v300
  %v302 = vrot.slane %v289, %v301
  %v306 = vadd.f32 %v277, %v294
  %v307 = vadd.f32 %v278, %v298
  %v308 = vadd.f32 %v279, %v302
  %v309 = vadd.f32 %v280, %v294
  %v310 = vadd.f32 %v281, %v298
  %v311 = vadd.f32 %v282, %v302
  %v312 = vadd.f32 %v283, %v294
  %v313 = vadd.f32 %v284, %v298
  %v314 = vadd.f32 %v285, %v302
  %v315 = vadd.f32 %v286, %v294
  %v316 = vadd.f32 %v287, %v298
  %v317 = vadd.f32 %v288, %v302
  %v318 = vmax.f32 %v306, 0.0
  %v319 = vmax.f32 %v307, 0.0
  %v320 = vmax.f32 %v308, 0.0
  %v321 = vmax.f32 %v309, 0.0
  %v322 = vmax.f32 %v310, 0.0
  %v323 = vmax.f32 %v311, 0.0
  %v324 = vmax.f32 %v312, 0.0
  %v325 = vmax.f32 %v313, 0.0
  %v326 = vmax.f32 %v314, 0.0
  %v327 = vmax.f32 %v315, 0.0
  %v328 = vmax.f32 %v316, 0.0
  %v329 = vmax.f32 %v317, 0.0
  %v330 = vpack.c.bf16 %v321, %v318
  %v331 = vpack.c.bf16 %v327, %v324
  %v332 = vpack.c.bf16 %v322, %v319
  %v333 = vpack.c.bf16 %v328, %v325
  %v334 = vpack.c.bf16 %v323, %v320
  %v335 = vpack.c.bf16 %v329, %v326
  %336 = vmatprep.subr.bf16.mxu0 0
  %337 = vmatpush1.bf16.xpose.msra.mxu0 %v332
  %338 = vmatprep.subr.bf16.mxu0 0
  %339 = vmatpush1.bf16.xpose.msra.mxu0 %v333
  %340 = vmatprep.subr.bf16.mxu0 0
  %341 = vmatpush1.bf16.xpose.msra.mxu0 0
  %342 = vmatprep.subr.bf16.mxu0 0
  %343 = vmatpush1.bf16.xpose.msra.mxu0 0
  %344 = vmatprep.subr.bf16.mxu0 0
  %345 = vmatpush1.bf16.xpose.msra.mxu0 0
  %346 = vmatprep.subr.bf16.mxu0 0
  %347 = vmatpush1.bf16.xpose.msra.mxu0 0
  %348 = vmatprep.subr.bf16.mxu0 0
  %349 = vmatpush1.bf16.xpose.msra.mxu0 0
  %350 = vmatprep.subr.bf16.mxu0 0
  %351 = vmatpush1.bf16.xpose.msra.mxu0 0
  %352 = vmatprep.subr.bf16.mxu0 0
  %353 = vmatpush1.bf16.xpose.msra.mxu0 0
  %354 = vmatprep.subr.bf16.mxu0 0
  %355 = vmatpush1.bf16.xpose.msra.mxu0 0
  %356 = vmatprep.subr.bf16.mxu0 0
  %357 = vmatpush1.bf16.xpose.msra.mxu0 0
  %358 = vmatprep.subr.bf16.mxu0 0
  %359 = vmatpush1.bf16.xpose.msra.mxu0 0
  %360 = vmatprep.subr.bf16.mxu0 0
  %361 = vmatpush1.bf16.xpose.msra.mxu0 0
  %362 = vmatprep.subr.bf16.mxu0 0
  %363 = vmatpush1.bf16.xpose.msra.mxu0 0
  %364 = vmatprep.subr.bf16.mxu0 0
  %365 = vmatpush1.bf16.xpose.msra.mxu0 0
  %366 = vmatprep.subr.bf16.mxu0 0
  %367 = vmatpush1.bf16.xpose.msra.mxu0 0
  %368 = vmatprep.mubr.bf16.mxu0 0
  %369 = vmatmul.mubr.bf16.gmra.mrb[0].mxu0 %v330
  %v370 = vpop.f32.mrb[0].mxu0
  %v371 = vadd.f32 %v64, %v370
  %v372 = vpop.f32.mrb[0].mxu0
  %v373 = vpop.f32.mrb[0].mxu0
  %v374 = vadd.f32 %v65, %v373
  %v375 = vpop.f32.mrb[0].mxu0
  %376 = vmatprep.mubr.bf16.mxu0 0
  %377 = vmatmul.mubr.bf16.gmra.mrb[0].mxu0 %v331
  %v378 = vpop.f32.mrb[0].mxu0
  %v379 = vadd.f32 %v66, %v378
  %v380 = vpop.f32.mrb[0].mxu0
  %v381 = vpop.f32.mrb[0].mxu0
  %v382 = vadd.f32 %v67, %v381
  %v383 = vpop.f32.mrb[0].mxu0
  %384 = vdwg.mxu0
  %v385 = vsel %vm151, %v371, -inf
  %386 = vmax.xlane.f32.xlu0 %v385
  %v387 = vpop.xlane.xlu0 %386
  %v388 = vsel %vm151, %v374, -inf
  %389 = vmax.xlane.f32.xlu0 %v388
  %v390 = vpop.xlane.xlu0 %389
  %v391 = vsel %vm151, %v379, -inf
  %392 = vmax.xlane.f32.xlu0 %v391
  %v393 = vpop.xlane.xlu0 %392
  %v394 = vsel %vm151, %v382, -inf
  %395 = vmax.xlane.f32.xlu0 %v394
  %v396 = vpop.xlane.xlu0 %395
  %v397 = vsub.f32 %v371, %v387
  %v398 = vsub.f32 %v374, %v390
  %v399 = vsub.f32 %v379, %v393
  %v400 = vsub.f32 %v382, %v396
  %v401 = vmul.f32 %v397, 1.442695
  %v402 = vpow.pop %v401
  %v403 = vmul.f32 %v398, 1.442695
  %v404 = vpow.pop %v403
  %v405 = vmul.f32 %v399, 1.442695
  %v406 = vpow.pop %v405
  %v407 = vmul.f32 %v400, 1.442695
  %v408 = vpow.pop %v407
  %v409 = vsel %vm151, %v402, 0.0
  %410 = vadd.xlane.f32.xlu0 %v409
  %v411 = vpop.xlane.xlu0 %410
  %v412 = vsel %vm151, %v404, 0.0
  %413 = vadd.xlane.f32.xlu0 %v412
  %v414 = vpop.xlane.xlu0 %413
  %v415 = vsel %vm151, %v406, 0.0
  %416 = vadd.xlane.f32.xlu0 %v415
  %v417 = vpop.xlane.xlu0 %416
  %v418 = vsel %vm151, %v408, 0.0
  %419 = vadd.xlane.f32.xlu0 %v418
  %v420 = vpop.xlane.xlu0 %419
  %v421 = vrcp.pop %v411
  %v422 = vrcp.pop %v414
  %v423 = vrcp.pop %v417
  %v424 = vrcp.pop %v420
  %v425 = vmul.f32 %v402, %v421
  %v426 = vmul.f32 %v404, %v422
  %v427 = vmul.f32 %v406, %v423
  %v428 = vmul.f32 %v408, %v424
  %v429 = vpack.c.bf16 %v426, %v425
  %v430 = vpack.c.bf16 %v428, %v427
  %v432 = vsel %vm151, %v429, 0
  %v435 = vsel %vm151, %v430, 0
  %437 = vmatprep.subr.bf16.mxu0 0
  %438 = vmatpush1.bf16.msra.mxu0 %v334
  %439 = vmatprep.subr.bf16.mxu0 0
  %440 = vmatpush1.bf16.msra.mxu0 %v335
  %441 = vmatprep.subr.bf16.mxu0 0
  %442 = vmatpush1.bf16.msra.mxu0 0
  %443 = vmatprep.subr.bf16.mxu0 0
  %444 = vmatpush1.bf16.msra.mxu0 0
  %445 = vmatprep.subr.bf16.mxu0 0
  %446 = vmatpush1.bf16.msra.mxu0 0
  %447 = vmatprep.subr.bf16.mxu0 0
  %448 = vmatpush1.bf16.msra.mxu0 0
  %449 = vmatprep.subr.bf16.mxu0 0
  %450 = vmatpush1.bf16.msra.mxu0 0
  %451 = vmatprep.subr.bf16.mxu0 0
  %452 = vmatpush1.bf16.msra.mxu0 0
  %453 = vmatprep.subr.bf16.mxu0 0
  %454 = vmatpush1.bf16.msra.mxu0 0
  %455 = vmatprep.subr.bf16.mxu0 0
  %456 = vmatpush1.bf16.msra.mxu0 0
  %457 = vmatprep.subr.bf16.mxu0 0
  %458 = vmatpush1.bf16.msra.mxu0 0
  %459 = vmatprep.subr.bf16.mxu0 0
  %460 = vmatpush1.bf16.msra.mxu0 0
  %461 = vmatprep.subr.bf16.mxu0 0
  %462 = vmatpush1.bf16.msra.mxu0 0
  %463 = vmatprep.subr.bf16.mxu0 0
  %464 = vmatpush1.bf16.msra.mxu0 0
  %465 = vmatprep.subr.bf16.mxu0 0
  %466 = vmatpush1.bf16.msra.mxu0 0
  %467 = vmatprep.subr.bf16.mxu0 0
  %468 = vmatpush1.bf16.msra.mxu0 0
  %469 = vmatprep.mubr.bf16.mxu0 0
  %470 = vmatmul.mubr.bf16.gmra.mrb[0].mxu0 %v432
  %v471 = vpop.f32.mrb[0].mxu0
  %v472 = vadd.f32 0.0, %v471
  %v473 = vpop.f32.mrb[0].mxu0
  %v474 = vpop.f32.mrb[0].mxu0
  %v475 = vadd.f32 0.0, %v474
  %v476 = vpop.f32.mrb[0].mxu0
  %477 = vmatprep.mubr.bf16.mxu0 0
  %478 = vmatmul.mubr.bf16.gmra.mrb[0].mxu0 %v435
  %v479 = vpop.f32.mrb[0].mxu0
  %v480 = vadd.f32 0.0, %v479
  %v481 = vpop.f32.mrb[0].mxu0
  %v482 = vpop.f32.mrb[0].mxu0
  %v483 = vadd.f32 0.0, %v482
  %v484 = vpop.f32.mrb[0].mxu0
  %485 = vdwg.mxu0
  %v486 = vpack.c.bf16 %v475, %v472
  %v487 = vpack.c.bf16 %v483, %v480
  %v488 = vld [vmem:[%s8] sm:$0xff]
  %v489 = vld [vmem:[%s8 + $0x8] sm:$0xf]
  %v490 = vld [vmem:[%s8 + $0xc] sm:$0xff]
  %v491 = vld [vmem:[%s8 + $0x14] sm:$0xf]
  %v492 = vld [vmem:[%s8 + $0x18] sm:$0xff]
  %v493 = vld [vmem:[%s8 + $0x20] sm:$0xf]
  %v494 = vld [vmem:[%s8 + $0x24] sm:$0xff]
  %v495 = vld [vmem:[%s8 + $0x2c] sm:$0xf]
  %v496 = vld [vmem:[%s8 + $0x30] sm:$0xff]
  %v497 = vld [vmem:[%s8 + $0x38] sm:$0xf]
  %v498 = vld [vmem:[%s8 + $0x3c] sm:$0xff]
  %v499 = vld [vmem:[%s8 + $0x44] sm:$0xf]
  %v500 = vld [vmem:[%s8 + $0x48] sm:$0xff]
  %v501 = vld [vmem:[%s8 + $0x50] sm:$0xf]
  %v502 = vld [vmem:[%s8 + $0x54] sm:$0xff]
  %v503 = vld [vmem:[%s8 + $0x5c] sm:$0xf]
  %v504 = vld [vmem:[%s8 + $0x60] sm:$0xff]
  %v505 = vld [vmem:[%s8 + $0x68] sm:$0xf]
  %v506 = vld [vmem:[%s8 + $0x6c] sm:$0xff]
  %v507 = vld [vmem:[%s8 + $0x74] sm:$0xf]
  %v508 = vld [vmem:[%s8 + $0x78] sm:$0xff]
  %v509 = vld [vmem:[%s8 + $0x80] sm:$0xf]
  %v510 = vld [vmem:[%s8 + $0x84] sm:$0xff]
  %v511 = vld [vmem:[%s8 + $0x8c] sm:$0xf]
  %v512 = vld [vmem:[%s8 + $0x90] sm:$0xff]
  %v513 = vld [vmem:[%s8 + $0x98] sm:$0xf]
  %v514 = vld [vmem:[%s8 + $0x9c] sm:$0xff]
  %v515 = vld [vmem:[%s8 + $0xa4] sm:$0xf]
  %v516 = vld [vmem:[%s8 + $0xa8] sm:$0xff]
  %v517 = vld [vmem:[%s8 + $0xb0] sm:$0xf]
  %v518 = vld [vmem:[%s8 + $0xb4] sm:$0xff]
  %v519 = vld [vmem:[%s8 + $0xbc] sm:$0xf]
  %v552 = vunpack.c.l.b16 %v488
  %v553 = vunpack.c.h.b16 %v488
  %v554 = vunpack.c.l.b16 %v489
  %v555 = vunpack.c.l.b16 %v490
  %v556 = vunpack.c.h.b16 %v490
  %v557 = vunpack.c.l.b16 %v491
  %v558 = vunpack.c.l.b16 %v492
  %v559 = vunpack.c.h.b16 %v492
  %v560 = vunpack.c.l.b16 %v493
  %v561 = vunpack.c.l.b16 %v494
  %v562 = vunpack.c.h.b16 %v494
  %v563 = vunpack.c.l.b16 %v495
  %v564 = vunpack.c.l.b16 %v496
  %v565 = vunpack.c.h.b16 %v496
  %v566 = vunpack.c.l.b16 %v497
  %v567 = vunpack.c.l.b16 %v498
  %v568 = vunpack.c.h.b16 %v498
  %v569 = vunpack.c.l.b16 %v499
  %v570 = vunpack.c.l.b16 %v500
  %v571 = vunpack.c.h.b16 %v500
  %v572 = vunpack.c.l.b16 %v501
  %v573 = vunpack.c.l.b16 %v502
  %v574 = vunpack.c.h.b16 %v502
  %v575 = vunpack.c.l.b16 %v503
  %v576 = vunpack.c.l.b16 %v504
  %v577 = vunpack.c.h.b16 %v504
  %v578 = vunpack.c.l.b16 %v505
  %v579 = vunpack.c.l.b16 %v506
  %v580 = vunpack.c.h.b16 %v506
  %v581 = vunpack.c.l.b16 %v507
  %v582 = vunpack.c.l.b16 %v508
  %v583 = vunpack.c.h.b16 %v508
  %v584 = vunpack.c.l.b16 %v509
  %v585 = vunpack.c.l.b16 %v510
  %v586 = vunpack.c.h.b16 %v510
  %v587 = vunpack.c.l.b16 %v511
  %v588 = vunpack.c.l.b16 %v512
  %v589 = vunpack.c.h.b16 %v512
  %v590 = vunpack.c.l.b16 %v513
  %v591 = vunpack.c.l.b16 %v514
  %v592 = vunpack.c.h.b16 %v514
  %v593 = vunpack.c.l.b16 %v515
  %v594 = vunpack.c.l.b16 %v516
  %v595 = vunpack.c.h.b16 %v516
  %v596 = vunpack.c.l.b16 %v517
  %v597 = vunpack.c.l.b16 %v518
  %v598 = vunpack.c.h.b16 %v518
  %v599 = vunpack.c.l.b16 %v519
  %v600 = vpack.c.b16 %v555, %v552
  %v601 = vpack.c.b16 %v556, %v553
  %v602 = vpack.c.b16 %v557, %v554
  %v603 = vpack.c.b16 %v561, %v558
  %v604 = vpack.c.b16 %v562, %v559
  %v605 = vpack.c.b16 %v563, %v560
  %v606 = vpack.c.b16 %v567, %v564
  %v607 = vpack.c.b16 %v568, %v565
  %v608 = vpack.c.b16 %v569, %v566
  %v609 = vpack.c.b16 %v573, %v570
  %v610 = vpack.c.b16 %v574, %v571
  %v611 = vpack.c.b16 %v575, %v572
  %v612 = vpack.c.b16 %v579, %v576
  %v613 = vpack.c.b16 %v580, %v577
  %v614 = vpack.c.b16 %v581, %v578
  %v615 = vpack.c.b16 %v585, %v582
  %v616 = vpack.c.b16 %v586, %v583
  %v617 = vpack.c.b16 %v587, %v584
  %v618 = vpack.c.b16 %v591, %v588
  %v619 = vpack.c.b16 %v592, %v589
  %v620 = vpack.c.b16 %v593, %v590
  %v621 = vpack.c.b16 %v597, %v594
  %v622 = vpack.c.b16 %v598, %v595
  %v623 = vpack.c.b16 %v599, %v596
  %648 = vmatprep.subr.bf16.mxu0 %v601
  %649 = vmatpush1.bf16.msra.mxu0 %v600
  %650 = vmatprep.subr.bf16.mxu0 %v604
  %651 = vmatpush1.bf16.msra.mxu0 %v603
  %652 = vmatprep.subr.bf16.mxu0 %v607
  %653 = vmatpush1.bf16.msra.mxu0 %v606
  %654 = vmatprep.subr.bf16.mxu0 %v610
  %655 = vmatpush1.bf16.msra.mxu0 %v609
  %656 = vmatprep.subr.bf16.mxu0 %v613
  %657 = vmatpush1.bf16.msra.mxu0 %v612
  %658 = vmatprep.subr.bf16.mxu0 %v616
  %659 = vmatpush1.bf16.msra.mxu0 %v615
  %660 = vmatprep.subr.bf16.mxu0 %v619
  %661 = vmatpush1.bf16.msra.mxu0 %v618
  %662 = vmatprep.subr.bf16.mxu0 %v622
  %663 = vmatpush1.bf16.msra.mxu0 %v621
  %664 = vmatprep.subr.bf16.mxu0 0
  %665 = vmatpush1.bf16.msra.mxu0 0
  %666 = vmatprep.subr.bf16.mxu0 0
  %667 = vmatpush1.bf16.msra.mxu0 0
  %668 = vmatprep.subr.bf16.mxu0 0
  %669 = vmatpush1.bf16.msra.mxu0 0
  %670 = vmatprep.subr.bf16.mxu0 0
  %671 = vmatpush1.bf16.msra.mxu0 0
  %672 = vmatprep.subr.bf16.mxu0 0
  %673 = vmatpush1.bf16.msra.mxu0 0
  %674 = vmatprep.subr.bf16.mxu0 0
  %675 = vmatpush1.bf16.msra.mxu0 0
  %676 = vmatprep.subr.bf16.mxu0 0
  %677 = vmatpush1.bf16.msra.mxu0 0
  %678 = vmatprep.subr.bf16.mxu0 0
  %679 = vmatpush1.bf16.msra.mxu0 0
  %680 = vmatprep.mubr.bf16.mxu0 0
  %681 = vmatmul.mubr.bf16.gmra.mrb[0].mxu0 %v486
  %v682 = vpop.f32.mrb[0].mxu0
  %v683 = vadd.f32 0.0, %v682
  %v684 = vpop.f32.mrb[0].mxu0
  %v685 = vadd.f32 0.0, %v684
  %v686 = vpop.f32.mrb[0].mxu0
  %v687 = vadd.f32 0.0, %v686
  %v688 = vpop.f32.mrb[0].mxu0
  %v689 = vadd.f32 0.0, %v688
  %690 = vmatprep.mubr.bf16.mxu0 0
  %691 = vmatmul.mubr.bf16.gmra.mrb[0].mxu0 %v487
  %v692 = vpop.f32.mrb[0].mxu0
  %v693 = vadd.f32 0.0, %v692
  %v694 = vpop.f32.mrb[0].mxu0
  %v695 = vadd.f32 0.0, %v694
  %v696 = vpop.f32.mrb[0].mxu0
  %v697 = vadd.f32 0.0, %v696
  %v698 = vpop.f32.mrb[0].mxu0
  %v699 = vadd.f32 0.0, %v698
  %700 = vdwg.mxu0
  %701 = vmatprep.subr.bf16.mxu0 0
  %702 = vmatpush1.bf16.msra.mxu0 %v602
  %703 = vmatprep.subr.bf16.mxu0 0
  %704 = vmatpush1.bf16.msra.mxu0 %v605
  %705 = vmatprep.subr.bf16.mxu0 0
  %706 = vmatpush1.bf16.msra.mxu0 %v608
  %707 = vmatprep.subr.bf16.mxu0 0
  %708 = vmatpush1.bf16.msra.mxu0 %v611
  %709 = vmatprep.subr.bf16.mxu0 0
  %710 = vmatpush1.bf16.msra.mxu0 %v614
  %711 = vmatprep.subr.bf16.mxu0 0
  %712 = vmatpush1.bf16.msra.mxu0 %v617
  %713 = vmatprep.subr.bf16.mxu0 0
  %714 = vmatpush1.bf16.msra.mxu0 %v620
  %715 = vmatprep.subr.bf16.mxu0 0
  %716 = vmatpush1.bf16.msra.mxu0 %v623
  %717 = vmatprep.subr.bf16.mxu0 0
  %718 = vmatpush1.bf16.msra.mxu0 0
  %719 = vmatprep.subr.bf16.mxu0 0
  %720 = vmatpush1.bf16.msra.mxu0 0
  %721 = vmatprep.subr.bf16.mxu0 0
  %722 = vmatpush1.bf16.msra.mxu0 0
  %723 = vmatprep.subr.bf16.mxu0 0
  %724 = vmatpush1.bf16.msra.mxu0 0
  %725 = vmatprep.subr.bf16.mxu0 0
  %726 = vmatpush1.bf16.msra.mxu0 0
  %727 = vmatprep.subr.bf16.mxu0 0
  %728 = vmatpush1.bf16.msra.mxu0 0
  %729 = vmatprep.subr.bf16.mxu0 0
  %730 = vmatpush1.bf16.msra.mxu0 0
  %731 = vmatprep.subr.bf16.mxu0 0
  %732 = vmatpush1.bf16.msra.mxu0 0
  %733 = vmatprep.mubr.bf16.mxu0 0
  %734 = vmatmul.mubr.bf16.gmra.mrb[0].mxu0 %v486
  %v735 = vpop.f32.mrb[0].mxu0
  %v736 = vadd.f32 0.0, %v735
  %v737 = vpop.f32.mrb[0].mxu0
  %v738 = vpop.f32.mrb[0].mxu0
  %v739 = vadd.f32 0.0, %v738
  %v740 = vpop.f32.mrb[0].mxu0
  %741 = vmatprep.mubr.bf16.mxu0 0
  %742 = vmatmul.mubr.bf16.gmra.mrb[0].mxu0 %v487
  %v743 = vpop.f32.mrb[0].mxu0
  %v744 = vadd.f32 0.0, %v743
  %v745 = vpop.f32.mrb[0].mxu0
  %v746 = vpop.f32.mrb[0].mxu0
  %v747 = vadd.f32 0.0, %v746
  %v748 = vpop.f32.mrb[0].mxu0
  %749 = vdwg.mxu0
  %v750 = vld [vmem:[%s9] sm:$0x7]
  %v752 = vlaneseq
  %v753 = vshrl.u32 %v752, 7
  %v754 = vsub.s32 0, %v753
  %v755 = vrot.slane %v750, %v754
  %v756 = vlaneseq
  %v757 = vshrl.u32 %v756, 7
  %v758 = vsub.s32 1, %v757
  %v759 = vrot.slane %v750, %v758
  %v760 = vlaneseq
  %v761 = vshrl.u32 %v760, 7
  %v762 = vsub.s32 2, %v761
  %v763 = vrot.slane %v750, %v762
  %v767 = vmul.f32 %v683, %v755
  %v768 = vmul.f32 %v685, %v759
  %v769 = vmul.f32 %v736, %v763
  %v770 = vmul.f32 %v687, %v755
  %v771 = vmul.f32 %v689, %v759
  %v772 = vmul.f32 %v739, %v763
  %v773 = vmul.f32 %v693, %v755
  %v774 = vmul.f32 %v695, %v759
  %v775 = vmul.f32 %v744, %v763
  %v776 = vmul.f32 %v697, %v755
  %v777 = vmul.f32 %v699, %v759
  %v778 = vmul.f32 %v747, %v763
  %v779 = vld [vmem:[%s10] sm:$0x7]
  %v781 = vlaneseq
  %v782 = vshrl.u32 %v781, 7
  %v783 = vsub.s32 0, %v782
  %v784 = vrot.slane %v779, %v783
  %v785 = vlaneseq
  %v786 = vshrl.u32 %v785, 7
  %v787 = vsub.s32 1, %v786
  %v788 = vrot.slane %v779, %v787
  %v789 = vlaneseq
  %v790 = vshrl.u32 %v789, 7
  %v791 = vsub.s32 2, %v790
  %v792 = vrot.slane %v779, %v791
  %v796 = vadd.f32 %v767, %v784
  %v797 = vadd.f32 %v768, %v788
  %v798 = vadd.f32 %v769, %v792
  %v799 = vadd.f32 %v770, %v784
  %v800 = vadd.f32 %v771, %v788
  %v801 = vadd.f32 %v772, %v792
  %v802 = vadd.f32 %v773, %v784
  %v803 = vadd.f32 %v774, %v788
  %v804 = vadd.f32 %v775, %v792
  %v805 = vadd.f32 %v776, %v784
  %v806 = vadd.f32 %v777, %v788
  %v807 = vadd.f32 %v778, %v792
  %v808 = vmax.f32 %v796, 0.0
  %v809 = vmax.f32 %v797, 0.0
  %v810 = vmax.f32 %v798, 0.0
  %v811 = vmax.f32 %v799, 0.0
  %v812 = vmax.f32 %v800, 0.0
  %v813 = vmax.f32 %v801, 0.0
  %v814 = vmax.f32 %v802, 0.0
  %v815 = vmax.f32 %v803, 0.0
  %v816 = vmax.f32 %v804, 0.0
  %v817 = vmax.f32 %v805, 0.0
  %v818 = vmax.f32 %v806, 0.0
  %v819 = vmax.f32 %v807, 0.0
  %v820 = vpack.c.bf16 %v811, %v808
  %v821 = vpack.c.bf16 %v817, %v814
  %v822 = vpack.c.bf16 %v812, %v809
  %v823 = vpack.c.bf16 %v818, %v815
  %v824 = vpack.c.bf16 %v813, %v810
  %v825 = vpack.c.bf16 %v819, %v816
  %826 = vmatprep.subr.bf16.mxu0 0
  %827 = vmatpush1.bf16.xpose.msra.mxu0 %v822
  %828 = vmatprep.subr.bf16.mxu0 0
  %829 = vmatpush1.bf16.xpose.msra.mxu0 %v823
  %830 = vmatprep.subr.bf16.mxu0 0
  %831 = vmatpush1.bf16.xpose.msra.mxu0 0
  %832 = vmatprep.subr.bf16.mxu0 0
  %833 = vmatpush1.bf16.xpose.msra.mxu0 0
  %834 = vmatprep.subr.bf16.mxu0 0
  %835 = vmatpush1.bf16.xpose.msra.mxu0 0
  %836 = vmatprep.subr.bf16.mxu0 0
  %837 = vmatpush1.bf16.xpose.msra.mxu0 0
  %838 = vmatprep.subr.bf16.mxu0 0
  %839 = vmatpush1.bf16.xpose.msra.mxu0 0
  %840 = vmatprep.subr.bf16.mxu0 0
  %841 = vmatpush1.bf16.xpose.msra.mxu0 0
  %842 = vmatprep.subr.bf16.mxu0 0
  %843 = vmatpush1.bf16.xpose.msra.mxu0 0
  %844 = vmatprep.subr.bf16.mxu0 0
  %845 = vmatpush1.bf16.xpose.msra.mxu0 0
  %846 = vmatprep.subr.bf16.mxu0 0
  %847 = vmatpush1.bf16.xpose.msra.mxu0 0
  %848 = vmatprep.subr.bf16.mxu0 0
  %849 = vmatpush1.bf16.xpose.msra.mxu0 0
  %850 = vmatprep.subr.bf16.mxu0 0
  %851 = vmatpush1.bf16.xpose.msra.mxu0 0
  %852 = vmatprep.subr.bf16.mxu0 0
  %853 = vmatpush1.bf16.xpose.msra.mxu0 0
  %854 = vmatprep.subr.bf16.mxu0 0
  %855 = vmatpush1.bf16.xpose.msra.mxu0 0
  %856 = vmatprep.subr.bf16.mxu0 0
  %857 = vmatpush1.bf16.xpose.msra.mxu0 0
  %858 = vmatprep.mubr.bf16.mxu0 0
  %859 = vmatmul.mubr.bf16.gmra.mrb[0].mxu0 %v820
  %v860 = vpop.f32.mrb[0].mxu0
  %v861 = vadd.f32 %v93, %v860
  %v862 = vpop.f32.mrb[0].mxu0
  %v863 = vpop.f32.mrb[0].mxu0
  %v864 = vadd.f32 %v94, %v863
  %v865 = vpop.f32.mrb[0].mxu0
  %866 = vmatprep.mubr.bf16.mxu0 0
  %867 = vmatmul.mubr.bf16.gmra.mrb[0].mxu0 %v821
  %v868 = vpop.f32.mrb[0].mxu0
  %v869 = vadd.f32 %v95, %v868
  %v870 = vpop.f32.mrb[0].mxu0
  %v871 = vpop.f32.mrb[0].mxu0
  %v872 = vadd.f32 %v96, %v871
  %v873 = vpop.f32.mrb[0].mxu0
  %874 = vdwg.mxu0
  %v875 = vsel %vm151, %v861, -inf
  %876 = vmax.xlane.f32.xlu0 %v875
  %v877 = vpop.xlane.xlu0 %876
  %v878 = vsel %vm151, %v864, -inf
  %879 = vmax.xlane.f32.xlu0 %v878
  %v880 = vpop.xlane.xlu0 %879
  %v881 = vsel %vm151, %v869, -inf
  %882 = vmax.xlane.f32.xlu0 %v881
  %v883 = vpop.xlane.xlu0 %882
  %v884 = vsel %vm151, %v872, -inf
  %885 = vmax.xlane.f32.xlu0 %v884
  %v886 = vpop.xlane.xlu0 %885
  %v887 = vsub.f32 %v861, %v877
  %v888 = vsub.f32 %v864, %v880
  %v889 = vsub.f32 %v869, %v883
  %v890 = vsub.f32 %v872, %v886
  %v891 = vmul.f32 %v887, 1.442695
  %v892 = vpow.pop %v891
  %v893 = vmul.f32 %v888, 1.442695
  %v894 = vpow.pop %v893
  %v895 = vmul.f32 %v889, 1.442695
  %v896 = vpow.pop %v895
  %v897 = vmul.f32 %v890, 1.442695
  %v898 = vpow.pop %v897
  %v899 = vsel %vm151, %v892, 0.0
  %900 = vadd.xlane.f32.xlu0 %v899
  %v901 = vpop.xlane.xlu0 %900
  %v902 = vsel %vm151, %v894, 0.0
  %903 = vadd.xlane.f32.xlu0 %v902
  %v904 = vpop.xlane.xlu0 %903
  %v905 = vsel %vm151, %v896, 0.0
  %906 = vadd.xlane.f32.xlu0 %v905
  %v907 = vpop.xlane.xlu0 %906
  %v908 = vsel %vm151, %v898, 0.0
  %909 = vadd.xlane.f32.xlu0 %v908
  %v910 = vpop.xlane.xlu0 %909
  %v911 = vrcp.pop %v901
  %v912 = vrcp.pop %v904
  %v913 = vrcp.pop %v907
  %v914 = vrcp.pop %v910
  %v915 = vmul.f32 %v892, %v911
  %v916 = vmul.f32 %v894, %v912
  %v917 = vmul.f32 %v896, %v913
  %v918 = vmul.f32 %v898, %v914
  %v919 = vpack.c.bf16 %v916, %v915
  %v920 = vpack.c.bf16 %v918, %v917
  %v922 = vsel %vm151, %v919, 0
  %v925 = vsel %vm151, %v920, 0
  %927 = vmatprep.subr.bf16.mxu0 0
  %928 = vmatpush1.bf16.msra.mxu0 %v824
  %929 = vmatprep.subr.bf16.mxu0 0
  %930 = vmatpush1.bf16.msra.mxu0 %v825
  %931 = vmatprep.subr.bf16.mxu0 0
  %932 = vmatpush1.bf16.msra.mxu0 0
  %933 = vmatprep.subr.bf16.mxu0 0
  %934 = vmatpush1.bf16.msra.mxu0 0
  %935 = vmatprep.subr.bf16.mxu0 0
  %936 = vmatpush1.bf16.msra.mxu0 0
  %937 = vmatprep.subr.bf16.mxu0 0
  %938 = vmatpush1.bf16.msra.mxu0 0
  %939 = vmatprep.subr.bf16.mxu0 0
  %940 = vmatpush1.bf16.msra.mxu0 0
  %941 = vmatprep.subr.bf16.mxu0 0
  %942 = vmatpush1.bf16.msra.mxu0 0
  %943 = vmatprep.subr.bf16.mxu0 0
  %944 = vmatpush1.bf16.msra.mxu0 0
  %945 = vmatprep.subr.bf16.mxu0 0
  %946 = vmatpush1.bf16.msra.mxu0 0
  %947 = vmatprep.subr.bf16.mxu0 0
  %948 = vmatpush1.bf16.msra.mxu0 0
  %949 = vmatprep.subr.bf16.mxu0 0
  %950 = vmatpush1.bf16.msra.mxu0 0
  %951 = vmatprep.subr.bf16.mxu0 0
  %952 = vmatpush1.bf16.msra.mxu0 0
  %953 = vmatprep.subr.bf16.mxu0 0
  %954 = vmatpush1.bf16.msra.mxu0 0
  %955 = vmatprep.subr.bf16.mxu0 0
  %956 = vmatpush1.bf16.msra.mxu0 0
  %957 = vmatprep.subr.bf16.mxu0 0
  %958 = vmatpush1.bf16.msra.mxu0 0
  %959 = vmatprep.mubr.bf16.mxu0 0
  %960 = vmatmul.mubr.bf16.gmra.mrb[0].mxu0 %v922
  %v961 = vpop.f32.mrb[0].mxu0
  %v962 = vadd.f32 0.0, %v961
  %v963 = vpop.f32.mrb[0].mxu0
  %v964 = vpop.f32.mrb[0].mxu0
  %v965 = vadd.f32 0.0, %v964
  %v966 = vpop.f32.mrb[0].mxu0
  %967 = vmatprep.mubr.bf16.mxu0 0
  %968 = vmatmul.mubr.bf16.gmra.mrb[0].mxu0 %v925
  %v969 = vpop.f32.mrb[0].mxu0
  %v970 = vadd.f32 0.0, %v969
  %v971 = vpop.f32.mrb[0].mxu0
  %v972 = vpop.f32.mrb[0].mxu0
  %v973 = vadd.f32 0.0, %v972
  %v974 = vpop.f32.mrb[0].mxu0
  %975 = vdwg.mxu0
  %976 = vst [vmem:[%s11] sm:$0xff] %v962
  %977 = vst [vmem:[%s11 + $0x8] sm:$0xff] %v965
  %978 = vst [vmem:[%s11 + $0x10] sm:$0xff] %v970
  %979 = vst [vmem:[%s11 + $0x18] sm:$0xff] %v973
  // Predicated region
  $region46: #{non_local_block.1} parent=0 // pred_check
    _
  $region47: #{non_local_block.1} parent=0 // pred_check_branch
    %981 = sbr.rel (0) target = $region49
  $region48: #{non_local_block.1} parent=0 // pred_region
    _
  $region49: #{non_local_block.1} parent=0 // pred_fallthru
    _
  // Predicated region
  $region50: #{non_local_block.1} parent=0 // pred_check
    _
  $region51: #{non_local_block.1} parent=0 // pred_check_branch
    %983 = sbr.rel (0) target = $region53
  $region52: #{non_local_block.1} parent=0 // pred_region
    _
  $region53: #{non_local_block.1} parent=0 // pred_fallthru
    _

</llo_original>
